<compile_context>
chip_gen: v5e
topology: v5e:2x2
jax: 0.10.0
libtpu: 0.0.40
codegen_flags: <defaults>
</compile_context>

<pallas_src>
import functools

import jax
import jax.numpy as jnp
from jax.experimental import pallas as pl
from jax.experimental.pallas import tpu as pltpu

BN_EPS = 1e-5
LANE = 128            # lane-dense padded width for the classifier output
MAX_ROW_TILE = 512    # adjacency row tile (output rows per grid step)
MAX_COL_TILE = 4096   # adjacency column (contraction) tile


def _round_up(x, m):
    return (x + m - 1) // m * m


def _next_pow2(x):
    p = 1
    while p < x:
        p *= 2
    return p


# ---------------------------------------------------------------------------
# Kernels.  Grid = (row_tiles ["parallel"], k_tiles ["arbitrary"]).
# Each kernel accumulates (A+I) @ feats over the K axis into an f32 scratch,
# then finalizes (D^{-1/2} row scaling, weight transform, relu / log_softmax)
# on the last K step.
# ---------------------------------------------------------------------------
def _layer1_kernel(adj_ref, xs_ref, d_ref, w1_ref, b1_ref, w2_ref,
                   o_ref, acc_ref):
    """h1 = relu((A_hat @ x) @ W1' + b1'); writes d * (h1 @ W2') in bf16."""
    k = pl.program_id(1)

    @pl.when(k == 0)
    def _():
        acc_ref[...] = jnp.zeros_like(acc_ref)

    # int8 -> bf16 cast right before the MXU dot (VPU cast hides under DMA).
    acc_ref[...] += jnp.dot(adj_ref[...].astype(jnp.bfloat16), xs_ref[...],
                            preferred_element_type=jnp.float32)

    @pl.when(k == pl.num_programs(1) - 1)
    def _():
        agg = acc_ref[...] * d_ref[...]                 # left D^{-1/2}
        h1 = jnp.dot(agg.astype(jnp.bfloat16), w1_ref[...],
                     preferred_element_type=jnp.float32) + b1_ref[...]
        h1 = jnp.maximum(h1, 0.0)                       # ReLU (dropout = id, eval)
        xw2 = jnp.dot(h1.astype(jnp.bfloat16), w2_ref[...],
                      preferred_element_type=jnp.float32)
        # Pre-scale rows by d^{-1/2} for layer 2's aggregation.
        o_ref[...] = (d_ref[...] * xw2).astype(o_ref.dtype)


def _layer2_kernel(adj_ref, xw2_ref, d_ref, b2_ref, o_ref, acc_ref):
    """h2 = relu(A_hat @ (h1 @ W2') + b2'); writes d * h2 (bf16, width=mid)."""
    k = pl.program_id(1)

    @pl.when(k == 0)
    def _():
        acc_ref[...] = jnp.zeros_like(acc_ref)

    acc_ref[...] += jnp.dot(adj_ref[...].astype(jnp.bfloat16), xw2_ref[...],
                            preferred_element_type=jnp.float32)

    @pl.when(k == pl.num_programs(1) - 1)
    def _():
        h2 = jnp.maximum(acc_ref[...] * d_ref[...] + b2_ref[...], 0.0)
        # Pre-scale rows by d^{-1/2} for layer 3's aggregation.
        o_ref[...] = (d_ref[...] * h2).astype(o_ref.dtype)


def _layer3_kernel(adj_ref, h2_ref, d_ref, w3_ref, b3_ref, o_ref, acc_ref, *,
                   out_dim):
    """logits = (A_hat @ h2) @ W3_pad + b3_pad; masked log_softmax (128 lanes)."""
    k = pl.program_id(1)

    @pl.when(k == 0)
    def _():
        acc_ref[...] = jnp.zeros_like(acc_ref)

    acc_ref[...] += jnp.dot(adj_ref[...].astype(jnp.bfloat16), h2_ref[...],
                            preferred_element_type=jnp.float32)

    @pl.when(k == pl.num_programs(1) - 1)
    def _():
        agg = acc_ref[...] * d_ref[...]
        logits = jnp.dot(agg.astype(jnp.bfloat16), w3_ref[...],
                         preferred_element_type=jnp.float32) + b3_ref[...]
        lane = jax.lax.broadcasted_iota(jnp.int32, logits.shape, 1)
        valid = lane < out_dim
        mx = jnp.max(jnp.where(valid, logits, -jnp.inf), axis=1, keepdims=True)
        z = logits - mx
        sumexp = jnp.sum(jnp.where(valid, jnp.exp(z), 0.0), axis=1, keepdims=True)
        # Lane-dense 128-wide store; padded lanes hold junk and are sliced away.
        o_ref[...] = z - jnp.log(sumexp)


# ---------------------------------------------------------------------------
# Wrapper glue (plain JAX).
# ---------------------------------------------------------------------------
def structural_adjacency(edge_index, num_nodes, n_pad):
    """0/1 int8 (A + I) padded to (n_pad, n_pad), plus D^{-1/2} column (f32)."""
    src, dst = edge_index[0], edge_index[1]
    adj = jnp.zeros((n_pad, n_pad), jnp.int8)
    adj = adj.at[src, dst].set(1)
    adj = adj.at[dst, src].set(1)                    # treat as undirected
    diag = jnp.arange(num_nodes)
    adj = adj.at[diag, diag].set(1)                  # self-loops
    deg = jnp.sum(adj, axis=1, dtype=jnp.int32).astype(jnp.float32)
    d_inv_sqrt = jnp.where(deg > 0, jax.lax.rsqrt(deg), 0.0)
    return adj, d_inv_sqrt.reshape(n_pad, 1)


def _fold_bn(w, b, gamma, beta, mean, var):
    """Fold eval-mode BatchNorm (running stats) into conv weight / bias."""
    scale = gamma * jax.lax.rsqrt(var + BN_EPS)
    return w * scale[None, :], (b - mean) * scale + beta


def _choose_tiles(n):
    """Row tile (megacore-aware), contraction tile, and padded node count."""
    # At least 2 row tiles when n > 32 so both v7x TensorCores get work.
    tm = min(MAX_ROW_TILE, max(32, _next_pow2(pl.cdiv(n, 2))))
    if n <= MAX_COL_TILE:
        n_pad = _round_up(n, tm)
        tk = n_pad                                   # single K step
    else:
        tk = MAX_COL_TILE                            # tm (pow2 <= 512) divides tk
        n_pad = _round_up(n, tk)
    return tm, tk, n_pad


def _vmem_cap_bytes():
    try:
        return int(pltpu.get_tpu_info().vmem_capacity_bytes)
    except Exception:
        return 64 * 1024 * 1024                      # conservative (v7x physical)


def _compiler_params(working_set_bytes):
    cap = _vmem_cap_bytes()
    budget = min(int(cap * 0.8), 100 * 1024 * 1024)  # ~100 MiB on 128-MiB parts
    limit = int(min(max(working_set_bytes + 8 * 1024 * 1024, 32 * 1024 * 1024),
                    budget))
    return pltpu.CompilerParams(
        dimension_semantics=("parallel", "arbitrary"),
        vmem_limit_bytes=limit)


def fraud_gnn_forward(x, edge_index, params):
    n, c_in = x.shape
    hidden = params["w1"].shape[1]
    mid = params["w2"].shape[1]
    out_dim = params["w3"].shape[1]

    tm, tk, n_pad = _choose_tiles(n)
    grid = (n_pad // tm, n_pad // tk)

    adj, d_col = structural_adjacency(edge_index, n, n_pad)

    # Fold eval-mode BN into conv1/conv2; pad classifier to lane-dense width.
    w1f, b1f = _fold_bn(params["w1"], params["b1"], params["g1"],
                        params["be1"], params["m1"], params["v1"])
    w2f, b2f = _fold_bn(params["w2"], params["b2"], params["g2"],
                        params["be2"], params["m2"], params["v2"])
    w3p = jnp.zeros((mid, LANE), jnp.float32).at[:, :out_dim].set(params["w3"])
    b3p = jnp.zeros((LANE,), jnp.float32).at[:out_dim].set(params["b3"])

    # D^{-1/2}-prescaled, zero-padded node features in bf16 for the MXU.
    x_pad = jnp.zeros((n_pad, c_in), jnp.float32).at[:n].set(x)
    x_scaled = (d_col * x_pad).astype(jnp.bfloat16)

    row = lambda v: v.reshape(1, -1).astype(jnp.float32)
    bf16 = lambda a: a.astype(jnp.bfloat16)

    adj_spec = pl.BlockSpec((tm, tk), lambda i, k: (i, k))
    feat_spec = lambda w: pl.BlockSpec((tk, w), lambda i, k: (k, 0))
    d_spec = pl.BlockSpec((tm, 1), lambda i, k: (i, 0))
    inv = lambda shape: pl.BlockSpec(shape, lambda i, k: (0, 0))
    out_spec = lambda w: pl.BlockSpec((tm, w), lambda i, k: (i, 0))

    adj_ws = 2 * tm * tk                # int8 adjacency tile, double-buffered
    d_ws = 2 * tm * 4

    # ---- layer 1 (aggregate-first, fused W1 + next-layer W2 transform) -----
    ws1 = (adj_ws + 2 * tk * c_in * 2 + d_ws
           + 2 * (c_in * hidden * 2 + hidden * 4 + hidden * mid * 2)
           + 2 * tm * mid * 2 + tm * c_in * 4)
    xw2s = pl.pallas_call(
        _layer1_kernel,
        out_shape=jax.ShapeDtypeStruct((n_pad, mid), jnp.bfloat16),
        grid=grid,
        in_specs=[adj_spec, feat_spec(c_in), d_spec,
                  inv((c_in, hidden)), inv((1, hidden)), inv((hidden, mid))],
        out_specs=out_spec(mid),
        scratch_shapes=[pltpu.VMEM((tm, c_in), jnp.float32)],
        compiler_params=_compiler_params(ws1),
    )(adj, x_scaled, d_col, bf16(w1f), row(b1f), bf16(w2f))

    # ---- layer 2 (outputs d * h2, width = mid; no 128-wide intermediate) ---
    ws2 = (adj_ws + 2 * tk * mid * 2 + d_ws + 2 * mid * 4
           + 2 * tm * mid * 2 + tm * mid * 4)
    h2s = pl.pallas_call(
        _layer2_kernel,
        out_shape=jax.ShapeDtypeStruct((n_pad, mid), jnp.bfloat16),
        grid=grid,
        in_specs=[adj_spec, feat_spec(mid), d_spec, inv((1, mid))],
        out_specs=out_spec(mid),
        scratch_shapes=[pltpu.VMEM((tm, mid), jnp.float32)],
        compiler_params=_compiler_params(ws2),
    )(adj, xw2s, d_col, row(b2f))

    # ---- layer 3 (classifier after aggregation) + masked log_softmax -------
    ws3 = (adj_ws + 2 * tk * mid * 2 + d_ws
           + 2 * (mid * LANE * 2 + LANE * 4)
           + 2 * tm * LANE * 4 + tm * mid * 4)
    logp = pl.pallas_call(
        functools.partial(_layer3_kernel, out_dim=out_dim),
        out_shape=jax.ShapeDtypeStruct((n_pad, LANE), jnp.float32),
        grid=grid,
        in_specs=[adj_spec, feat_spec(mid), d_spec,
                  inv((mid, LANE)), inv((1, LANE))],
        out_specs=out_spec(LANE),
        scratch_shapes=[pltpu.VMEM((tm, mid), jnp.float32)],
        compiler_params=_compiler_params(ws3),
    )(adj, h2s, d_col, bf16(w3p), row(b3p))

    return logp[:n, :out_dim]


# ---------------------------------------------------------------------------
# Pure-JAX f32 reference (unfolded BN) for correctness checking.
# ---------------------------------------------------------------------------
def _reference_forward(x, edge_index, params):
    n = x.shape[0]
    src, dst = edge_index[0], edge_index[1]
    a = jnp.zeros((n, n), jnp.float32)
    a = a.at[src, dst].set(1.0).at[dst, src].set(1.0)
    a = a.at[jnp.arange(n), jnp.arange(n)].set(1.0)
    deg = a.sum(axis=1)
    dm = jnp.where(deg > 0, jax.lax.rsqrt(deg), 0.0)
    a_hat = a * dm[:, None] * dm[None, :]

    def bn(h, g, be, m, v):
        return (h - m) * g * jax.lax.rsqrt(v + BN_EPS) + be

    h = a_hat @ x @ params["w1"] + params["b1"]
    h = jax.nn.relu(bn(h, params["g1"], params["be1"], params["m1"], params["v1"]))
    h = a_hat @ h @ params["w2"] + params["b2"]
    h = jax.nn.relu(bn(h, params["g2"], params["be2"], params["m2"], params["v2"]))
    h = a_hat @ h @ params["w3"] + params["b3"]
    return jax.nn.log_softmax(h, axis=1)


def init_params(key, in_channels, hidden=128, mid=64, out=2):
    ks = jax.random.split(key, 11)

    def glorot(k, fan_in, fan_out):
        lim = (6.0 / (fan_in + fan_out)) ** 0.5
        return jax.random.uniform(k, (fan_in, fan_out), jnp.float32, -lim, lim)

    return {
        "w1": glorot(ks[0], in_channels, hidden),
        "b1": jnp.zeros((hidden,), jnp.float32),
        "g1": jax.random.uniform(ks[3], (hidden,), jnp.float32, 0.5, 1.5),
        "be1": 0.1 * jax.random.normal(ks[4], (hidden,), jnp.float32),
        "m1": 0.1 * jax.random.normal(ks[5], (hidden,), jnp.float32),
        "v1": jax.random.uniform(ks[6], (hidden,), jnp.float32, 0.5, 1.5),
        "w2": glorot(ks[1], hidden, mid),
        "b2": jnp.zeros((mid,), jnp.float32),
        "g2": jax.random.uniform(ks[7], (mid,), jnp.float32, 0.5, 1.5),
        "be2": 0.1 * jax.random.normal(ks[8], (mid,), jnp.float32),
        "m2": 0.1 * jax.random.normal(ks[9], (mid,), jnp.float32),
        "v2": jax.random.uniform(ks[10], (mid,), jnp.float32, 0.5, 1.5),
        "w3": glorot(ks[2], mid, out),
        "b3": jnp.zeros((out,), jnp.float32),
    }


if __name__ == "__main__":
    key = jax.random.PRNGKey(0)
    k_x, k_e, k_p = jax.random.split(key, 3)

    num_nodes = 64
    in_channels = 16
    num_edges = 256

    x = jax.random.normal(k_x, (num_nodes, in_channels), jnp.float32)
    edge_index = jax.random.randint(k_e, (2, num_edges), 0, num_nodes, jnp.int32)
    params = init_params(k_p, in_channels, hidden=128, mid=64, out=2)

    out = fraud_gnn_forward(x, edge_index, params)
    out = jax.block_until_ready(out)

    assert out.shape == (num_nodes, 2)
    # log_softmax rows should exponentiate-sum to ~1
    assert jnp.allclose(jnp.sum(jnp.exp(out), axis=1), 1.0, atol=1e-3)
    # match the pure-JAX f32 reference (bf16 feature casts -> loose tolerance)
    ref = _reference_forward(x, edge_index, params)
    assert float(jnp.max(jnp.abs(out - ref))) < 0.15
    print("KERNEL_OK")
</pallas_src>

<mosaic_0001>
module attributes {stable_mosaic.version = 11 : i64} {
  func.func @_layer1_kernel(%arg0: i32, %arg1: i32, %arg2: memref<32x64xi8, #tpu.memory_space<vmem>>, %arg3: memref<64x16xbf16, #tpu.memory_space<vmem>>, %arg4: memref<32x1xf32, #tpu.memory_space<vmem>>, %arg5: memref<16x128xbf16, #tpu.memory_space<vmem>>, %arg6: memref<1x128xf32, #tpu.memory_space<vmem>>, %arg7: memref<128x64xbf16, #tpu.memory_space<vmem>>, %arg8: memref<32x64xbf16, #tpu.memory_space<vmem>>, %arg9: memref<32x16xf32, #tpu.memory_space<vmem>>) attributes {dimension_semantics = [#tpu.dimension_semantics<parallel>, #tpu.dimension_semantics<arbitrary>], iteration_bounds = array<i64: 2, 1>, scalar_prefetch = 0 : i64, scratch_operands = 1 : i64, tpu.core_type = #tpu.core_type<tc>, window_params = [{transform_indices = @transform_0, window_bounds = array<i64: 32, 64>}, {transform_indices = @transform_1, window_bounds = array<i64: 64, 16>}, {transform_indices = @transform_2, window_bounds = array<i64: 32, 1>}, {pipeline_mode = #tpu.pipeline_mode<synchronous>, transform_indices = @transform_3, window_bounds = array<i64: 16, 128>}, {pipeline_mode = #tpu.pipeline_mode<synchronous>, transform_indices = @transform_4, window_bounds = array<i64: 1, 128>}, {pipeline_mode = #tpu.pipeline_mode<synchronous>, transform_indices = @transform_5, window_bounds = array<i64: 128, 64>}, {transform_indices = @transform_6, window_bounds = array<i64: 32, 64>}]} {
    %c0_i32 = arith.constant 0 : i32
    %0 = arith.cmpi eq, %arg1, %c0_i32 : i32
    %1 = arith.extui %0 : i1 to i32
    %c0_i32_0 = arith.constant 0 : i32
    %2 = arith.cmpi ne, %1, %c0_i32_0 : i32
    scf.if %2 {
      %cst_10 = arith.constant 0.000000e+00 : f32
      %13 = vector.broadcast %cst_10 : f32 to vector<32x16xf32>
      %c0_11 = arith.constant 0 : index
      %c0_12 = arith.constant 0 : index
      %14 = vector.load %arg9[%c0_11, %c0_12] : memref<32x16xf32, #tpu.memory_space<vmem>>, vector<32x16xf32>
      tpu.vector_store %arg9[%c0_11, %c0_12], %13 {strides = array<i32>} : memref<32x16xf32, #tpu.memory_space<vmem>>, vector<32x16xf32>,
    } else {
    }
    %c0 = arith.constant 0 : index
    %c0_1 = arith.constant 0 : index
    %3 = vector.load %arg9[%c0, %c0_1] : memref<32x16xf32, #tpu.memory_space<vmem>>, vector<32x16xf32>
    %c0_2 = arith.constant 0 : index
    %c0_3 = arith.constant 0 : index
    %4 = vector.load %arg2[%c0_2, %c0_3] : memref<32x64xi8, #tpu.memory_space<vmem>>, vector<32x64xi8>
    %5 = arith.sitofp %4 : vector<32x64xi8> to vector<32x64xbf16>
    %c0_4 = arith.constant 0 : index
    %c0_5 = arith.constant 0 : index
    %6 = vector.load %arg3[%c0_4, %c0_5] : memref<64x16xbf16, #tpu.memory_space<vmem>>, vector<64x16xbf16>
    %cst = arith.constant dense<0.000000e+00> : vector<32x16xf32>
    %7 = tpu.matmul %5, %6, %cst {dimension_numbers = #tpu.dot_dimension_numbers<[1], [0], [0], [1], [0, 0, 1, 1], [], []>} : vector<32x64xbf16>, vector<64x16xbf16>, vector<32x16xf32> -> vector<32x16xf32>
    %8 = arith.addf %3, %7 : vector<32x16xf32>
    %c0_6 = arith.constant 0 : index
    %c0_7 = arith.constant 0 : index
    %9 = vector.load %arg9[%c0_6, %c0_7] : memref<32x16xf32, #tpu.memory_space<vmem>>, vector<32x16xf32>
    tpu.vector_store %arg9[%c0_6, %c0_7], %8 {strides = array<i32>} : memref<32x16xf32, #tpu.memory_space<vmem>>, vector<32x16xf32>,
    %c0_i32_8 = arith.constant 0 : i32
    %10 = arith.cmpi eq, %arg1, %c0_i32_8 : i32
    %11 = arith.extui %10 : i1 to i32
    %c0_i32_9 = arith.constant 0 : i32
    %12 = arith.cmpi ne, %11, %c0_i32_9 : i32
    scf.if %12 {
      %c0_10 = arith.constant 0 : index
      %c0_11 = arith.constant 0 : index
      %13 = vector.load %arg9[%c0_10, %c0_11] : memref<32x16xf32, #tpu.memory_space<vmem>>, vector<32x16xf32>
      %c0_12 = arith.constant 0 : index
      %c0_13 = arith.constant 0 : index
      %14 = vector.load %arg4[%c0_12, %c0_13] : memref<32x1xf32, #tpu.memory_space<vmem>>, vector<32x1xf32>
      %15 = vector.broadcast %14 : vector<32x1xf32> to vector<32x16xf32>
      %16 = arith.mulf %13, %15 : vector<32x16xf32>
      %17 = arith.truncf %16 : vector<32x16xf32> to vector<32x16xbf16>
      %c0_14 = arith.constant 0 : index
      %c0_15 = arith.constant 0 : index
      %18 = vector.load %arg5[%c0_14, %c0_15] : memref<16x128xbf16, #tpu.memory_space<vmem>>, vector<16x128xbf16>
      %cst_16 = arith.constant dense<0.000000e+00> : vector<32x128xf32>
      %19 = tpu.matmul %17, %18, %cst_16 {dimension_numbers = #tpu.dot_dimension_numbers<[1], [0], [0], [1], [0, 0, 1, 1], [], []>} : vector<32x16xbf16>, vector<16x128xbf16>, vector<32x128xf32> -> vector<32x128xf32>
      %c0_17 = arith.constant 0 : index
      %c0_18 = arith.constant 0 : index
      %20 = vector.load %arg6[%c0_17, %c0_18] : memref<1x128xf32, #tpu.memory_space<vmem>>, vector<1x128xf32>
      %21 = vector.broadcast %20 : vector<1x128xf32> to vector<32x128xf32>
      %22 = arith.addf %19, %21 : vector<32x128xf32>
      %cst_19 = arith.constant 0.000000e+00 : f32
      %23 = vector.broadcast %cst_19 : f32 to vector<32x128xf32>
      %24 = arith.maximumf %22, %23 : vector<32x128xf32>
      %25 = arith.truncf %24 : vector<32x128xf32> to vector<32x128xbf16>
      %c0_20 = arith.constant 0 : index
      %c0_21 = arith.constant 0 : index
      %26 = vector.load %arg7[%c0_20, %c0_21] : memref<128x64xbf16, #tpu.memory_space<vmem>>, vector<128x64xbf16>
      %cst_22 = arith.constant dense<0.000000e+00> : vector<32x64xf32>
      %27 = tpu.matmul %25, %26, %cst_22 {dimension_numbers = #tpu.dot_dimension_numbers<[1], [0], [0], [1], [0, 0, 1, 1], [], []>} : vector<32x128xbf16>, vector<128x64xbf16>, vector<32x64xf32> -> vector<32x64xf32>
      %c0_23 = arith.constant 0 : index
      %c0_24 = arith.constant 0 : index
      %28 = vector.load %arg4[%c0_23, %c0_24] : memref<32x1xf32, #tpu.memory_space<vmem>>, vector<32x1xf32>
      %29 = vector.broadcast %28 : vector<32x1xf32> to vector<32x64xf32>
      %30 = arith.mulf %29, %27 : vector<32x64xf32>
      %31 = arith.truncf %30 : vector<32x64xf32> to vector<32x64xbf16>
      %c0_25 = arith.constant 0 : index
      %c0_26 = arith.constant 0 : index
      %32 = vector.load %arg8[%c0_25, %c0_26] : memref<32x64xbf16, #tpu.memory_space<vmem>>, vector<32x64xbf16>
      tpu.vector_store %arg8[%c0_25, %c0_26], %31 {strides = array<i32>} : memref<32x64xbf16, #tpu.memory_space<vmem>>, vector<32x64xbf16>,
    } else {
    }
    return
  }
  func.func @transform_0(%arg0: i32, %arg1: i32) -> (i32, i32) {
    %c0_i32 = arith.constant 0 : i32
    return %arg0, %arg1 : i32, i32
  }
  func.func @transform_1(%arg0: i32, %arg1: i32) -> (i32, i32) {
    %c0_i32 = arith.constant 0 : i32
    %c0_i32_0 = arith.constant 0 : i32
    return %arg1, %c0_i32 : i32, i32
  }
  func.func @transform_2(%arg0: i32, %arg1: i32) -> (i32, i32) {
    %c0_i32 = arith.constant 0 : i32
    %c0_i32_0 = arith.constant 0 : i32
    return %arg0, %c0_i32 : i32, i32
  }
  func.func @transform_3(%arg0: i32, %arg1: i32) -> (i32, i32) {
    %c0_i32 = arith.constant 0 : i32
    %c0_i32_0 = arith.constant 0 : i32
    %c0_i32_1 = arith.constant 0 : i32
    return %c0_i32, %c0_i32_0 : i32, i32
  }
  func.func @transform_4(%arg0: i32, %arg1: i32) -> (i32, i32) {
    %c0_i32 = arith.constant 0 : i32
    %c0_i32_0 = arith.constant 0 : i32
    %c0_i32_1 = arith.constant 0 : i32
    return %c0_i32, %c0_i32_0 : i32, i32
  }
  func.func @transform_5(%arg0: i32, %arg1: i32) -> (i32, i32) {
    %c0_i32 = arith.constant 0 : i32
    %c0_i32_0 = arith.constant 0 : i32
    %c0_i32_1 = arith.constant 0 : i32
    return %c0_i32, %c0_i32_0 : i32, i32
  }
  func.func @transform_6(%arg0: i32, %arg1: i32) -> (i32, i32) {
    %c0_i32 = arith.constant 0 : i32
    %c0_i32_0 = arith.constant 0 : i32
    return %arg0, %c0_i32 : i32, i32
  }
}

</mosaic_0001>

<llo_original>
// kernel: tpu_custom_call.1
$region0: #{tpu_custom_call.1}
  #allocation0 [shape = 'u32[]', space=smem, size = 0x4, offset = 0x4, fixed_abs, tag = 'smem constant byte address 0x4 - core index']
  #allocation1 [shape = 'u32[72,128]{1,0:T(1,128)}', space=vmem, size = 0x9000, scoped, tag = 'internal scratch']
  #allocation2 [shape = 'f32[32,16]{1,0:T(8,128)}', space=vmem, size = 0x4000, scoped, tag = 'scratch operand']
  %s0 = inlined_call_operand.vmem [shape: s8[64,64], index: 0, kind: input, shape index: {}]
  %s1 = inlined_call_operand.vmem [shape: bf16[64,16], index: 1, kind: input, shape index: {}]
  %s2 = inlined_call_operand.vmem [shape: f32[64,1], index: 2, kind: input, shape index: {}]
  %s3 = inlined_call_operand.vmem [shape: bf16[16,128], index: 3, kind: input, shape index: {}]
  %s4 = inlined_call_operand.vmem [shape: f32[1,128], index: 4, kind: input, shape index: {}]
  %s5 = inlined_call_operand.vmem [shape: bf16[128,64], index: 5, kind: input, shape index: {}]
  %s6 = inlined_call_operand.hbm [shape: bf16[64,64], index: 6, kind: output, shape index: {}]
  %s7 = sld [smem:[#allocation0]]
  $region65: #{tpu_custom_call.1} parent=0
    _
  %s9 = ssub.s32 1, %s7
  %s10 = scalar_select 0, %s9, %s7
  $region1: #{tpu_custom_call.1} parent=0
    #allocation3 [shape = 'u8[16384]{0}', space=vmem, size = 0x4000, scoped, tag = 'output window, operand 0']
    #allocation4 [shape = 's32[2]{0}', space=sflag, size = 0x8, scoped, tag = 'scoped memory for tpu_custom_call.1']
    %11 = vsyncpa [#allocation4], 0
    %s12 = scalar_lea.sflag [#allocation4], 1
    %13 = vsyncpa %s12, 0
    loop: start=0, step=1, limit=4
    $region2: #{tpu_custom_call.1} parent=1 // loop_pre_header
      _
    $region3: #{tpu_custom_call.1} parent=1 // loop_header
      %s15 = sphi 0, %s19
      %p16 = scmp.ge.s32.totalorder %s15, 4
      %s22 = sphi 0, %s34
      %s23 = sphi 0, %s30
      %s24 = sphi 0, %s22
      %s25 = sphi 0, %s23
      %s26 = sphi 0, %s24
      %s27 = sphi 0, %s25
      %s39 = sphi 0, %s41
      %s42 = sphi 0, %s39
      %s43 = sphi 0, %s42
      %s59 = sphi 0, %s43
      %s65 = sphi 0, %s67
      %s68 = sphi 0, %s65
      %s69 = sphi 0, %s68
      %s85 = sphi 0, %s69
      %s91 = sphi 0, %s93
      %s94 = sphi 0, %s91
      %s95 = sphi 0, %s94
      %s111 = sphi 0, %s95
      %s115 = sphi 0, %s115
      %s117 = sphi 0, %s115
      %s118 = sphi 0, %s117
      %s132 = sphi 0, %s118
      %s136 = sphi 0, %s136
      %s138 = sphi 0, %s136
      %s139 = sphi 0, %s138
      %s153 = sphi 0, %s139
      %s157 = sphi 0, %s157
      %s159 = sphi 0, %s157
      %s160 = sphi 0, %s159
      %s174 = sphi 0, %s160
      %s180 = sphi 0, %s182
      %s183 = sphi 0, %s180
      %s184 = sphi 0, %s183
      %s200 = sphi 0, %s184
    $region4: #{tpu_custom_call.1} parent=1 // loop_header_branch
      %18 = sbr.rel (%p16) target = $region8
    $region5: #{tpu_custom_call.1} parent=1 // loop_body
      %s20 = ssub.s32 %s15, 1
      %s21 = ssub.s32 %s15, 2
      %s28 = sadd.s32 1, %s23
      %p29 = scmp.ge.s32.totalorder %s28, 1
      %s30 = scalar_select %p29, 0, %s28
      %s31 = sadd.s32 1, %s22
      %s32 = scalar_select %p29, %s31, %s22
      %p33 = scmp.ge.s32.totalorder %s32, 2
      %s34 = scalar_select %p33, 0, %s32
      %s35 = ssub.s32 %s22, %s34
      %s36 = ssub.s32 %s23, %s30
      %s37 = sor.u32 %s35, %s36
      %p38 = scmp.eq.s32.totalorder %s37, 0
      %s40 = sadd.s32 %s39, 1
      %s41 = scalar_select %p38, %s39, %s40
      %p44 = pneg %p38
      %p45 = scmp.eq.s32.totalorder %s15, 1
      %p46 = por %p44, %p45
      %p47 = scmp.ne.s32.totalorder %s39, %s42
      %p48 = scmp.eq.s32.totalorder %s15, 0
      %p49 = por %p47, %p48
      %p50 = scmp.ne.s32.totalorder %s39, %s42
      %p51 = scmp.eq.s32.totalorder %s20, 1
      %p52 = por %p50, %p51
      %p53 = scmp.ne.s32.totalorder %s42, %s43
      %p54 = scmp.eq.s32.totalorder %s20, 0
      %p55 = por %p53, %p54
      %p56 = scmp.ne.s32.totalorder %s42, %s43
      %p57 = scmp.eq.s32.totalorder %s21, 1
      %p58 = por %p56, %p57
      %p60 = scmp.ne.s32.totalorder %s43, %s59
      %p61 = scmp.eq.s32.totalorder %s21, 0
      %p62 = por %p60, %p61
      %s63 = ssub.s32 %s23, %s30
      %p64 = scmp.eq.s32.totalorder %s63, 0
      %s66 = sadd.s32 %s65, 1
      %s67 = scalar_select %p64, %s65, %s66
      %p70 = pneg %p64
      %p71 = scmp.eq.s32.totalorder %s15, 1
      %p72 = por %p70, %p71
      %p73 = scmp.ne.s32.totalorder %s65, %s68
      %p74 = scmp.eq.s32.totalorder %s15, 0
      %p75 = por %p73, %p74
      %p76 = scmp.ne.s32.totalorder %s65, %s68
      %p77 = scmp.eq.s32.totalorder %s20, 1
      %p78 = por %p76, %p77
      %p79 = scmp.ne.s32.totalorder %s68, %s69
      %p80 = scmp.eq.s32.totalorder %s20, 0
      %p81 = por %p79, %p80
      %p82 = scmp.ne.s32.totalorder %s68, %s69
      %p83 = scmp.eq.s32.totalorder %s21, 1
      %p84 = por %p82, %p83
      %p86 = scmp.ne.s32.totalorder %s69, %s85
      %p87 = scmp.eq.s32.totalorder %s21, 0
      %p88 = por %p86, %p87
      %s89 = ssub.s32 %s22, %s34
      %p90 = scmp.eq.s32.totalorder %s89, 0
      %s92 = sadd.s32 %s91, 1
      %s93 = scalar_select %p90, %s91, %s92
      %p96 = pneg %p90
      %p97 = scmp.eq.s32.totalorder %s15, 1
      %p98 = por %p96, %p97
      %p99 = scmp.ne.s32.totalorder %s91, %s94
      %p100 = scmp.eq.s32.totalorder %s15, 0
      %p101 = por %p99, %p100
      %p102 = scmp.ne.s32.totalorder %s91, %s94
      %p103 = scmp.eq.s32.totalorder %s20, 1
      %p104 = por %p102, %p103
      %p105 = scmp.ne.s32.totalorder %s94, %s95
      %p106 = scmp.eq.s32.totalorder %s20, 0
      %p107 = por %p105, %p106
      %p108 = scmp.ne.s32.totalorder %s94, %s95
      %p109 = scmp.eq.s32.totalorder %s21, 1
      %p110 = por %p108, %p109
      %p112 = scmp.ne.s32.totalorder %s95, %s111
      %p113 = scmp.eq.s32.totalorder %s21, 0
      %p114 = por %p112, %p113
      %s116 = sadd.s32 %s115, 1
      %p119 = scmp.eq.s32.totalorder %s15, 1
      %p120 = scmp.ne.s32.totalorder %s115, %s117
      %p121 = scmp.eq.s32.totalorder %s15, 0
      %p122 = por %p120, %p121
      %p123 = scmp.ne.s32.totalorder %s115, %s117
      %p124 = scmp.eq.s32.totalorder %s20, 1
      %p125 = por %p123, %p124
      %p126 = scmp.ne.s32.totalorder %s117, %s118
      %p127 = scmp.eq.s32.totalorder %s20, 0
      %p128 = por %p126, %p127
      %p129 = scmp.ne.s32.totalorder %s117, %s118
      %p130 = scmp.eq.s32.totalorder %s21, 1
      %p131 = por %p129, %p130
      %p133 = scmp.ne.s32.totalorder %s118, %s132
      %p134 = scmp.eq.s32.totalorder %s21, 0
      %p135 = por %p133, %p134
      %s137 = sadd.s32 %s136, 1
      %p140 = scmp.eq.s32.totalorder %s15, 1
      %p141 = scmp.ne.s32.totalorder %s136, %s138
      %p142 = scmp.eq.s32.totalorder %s15, 0
      %p143 = por %p141, %p142
      %p144 = scmp.ne.s32.totalorder %s136, %s138
      %p145 = scmp.eq.s32.totalorder %s20, 1
      %p146 = por %p144, %p145
      %p147 = scmp.ne.s32.totalorder %s138, %s139
      %p148 = scmp.eq.s32.totalorder %s20, 0
      %p149 = por %p147, %p148
      %p150 = scmp.ne.s32.totalorder %s138, %s139
      %p151 = scmp.eq.s32.totalorder %s21, 1
      %p152 = por %p150, %p151
      %p154 = scmp.ne.s32.totalorder %s139, %s153
      %p155 = scmp.eq.s32.totalorder %s21, 0
      %p156 = por %p154, %p155
      %s158 = sadd.s32 %s157, 1
      %p161 = scmp.eq.s32.totalorder %s15, 1
      %p162 = scmp.ne.s32.totalorder %s157, %s159
      %p163 = scmp.eq.s32.totalorder %s15, 0
      %p164 = por %p162, %p163
      %p165 = scmp.ne.s32.totalorder %s157, %s159
      %p166 = scmp.eq.s32.totalorder %s20, 1
      %p167 = por %p165, %p166
      %p168 = scmp.ne.s32.totalorder %s159, %s160
      %p169 = scmp.eq.s32.totalorder %s20, 0
      %p170 = por %p168, %p169
      %p171 = scmp.ne.s32.totalorder %s159, %s160
      %p172 = scmp.eq.s32.totalorder %s21, 1
      %p173 = por %p171, %p172
      %p175 = scmp.ne.s32.totalorder %s160, %s174
      %p176 = scmp.eq.s32.totalorder %s21, 0
      %p177 = por %p175, %p176
      %s178 = ssub.s32 %s22, %s34
      %p179 = scmp.eq.s32.totalorder %s178, 0
      %s181 = sadd.s32 %s180, 1
      %s182 = scalar_select %p179, %s180, %s181
      %p185 = pneg %p179
      %p186 = scmp.eq.s32.totalorder %s15, 1
      %p187 = por %p185, %p186
      %p188 = scmp.ne.s32.totalorder %s180, %s183
      %p189 = scmp.eq.s32.totalorder %s15, 0
      %p190 = por %p188, %p189
      %p191 = scmp.ne.s32.totalorder %s180, %s183
      %p192 = scmp.eq.s32.totalorder %s20, 1
      %p193 = por %p191, %p192
      %p194 = scmp.ne.s32.totalorder %s183, %s184
      %p195 = scmp.eq.s32.totalorder %s20, 0
      %p196 = por %p194, %p195
      %p197 = scmp.ne.s32.totalorder %s183, %s184
      %p198 = scmp.eq.s32.totalorder %s21, 1
      %p199 = por %p197, %p198
      %p201 = scmp.ne.s32.totalorder %s184, %s200
      %p202 = scmp.eq.s32.totalorder %s21, 0
      %p203 = por %p201, %p202
      %p204 = scmp.le.s32.totalorder 1, %s15
      %p205 = scmp.lt.s32.totalorder %s15, 3
      %p206 = pnand %p204, %p205
      %p207 = pneg %p206
      // Predicated region
      $region9: #{tpu_custom_call.1} parent=5 // pred_check
        _
      $region10: #{tpu_custom_call.1} parent=5 // pred_check_branch
        %209 = sbr.rel (%p206) target = $region12
      $region11: #{tpu_custom_call.1} parent=5 // pred_region
        %s210 = ssub.s32 %s15, 1
        // Predicated region
        $region13: #{tpu_custom_call.1} parent=11 // pred_check
          %p211 = pneg %p81
        $region14: #{tpu_custom_call.1} parent=11 // pred_check_branch
          %213 = sbr.rel (%p211) target = $region16
        $region15: #{tpu_custom_call.1} parent=11 // pred_region
          %s214 = smul.u32 8, %s25
          %p215 = scmp.lt.s32.totalorder %s214, 7
          %s216 = scalar_select %p215, %s214, 7
          %s217 = smul.addr %s216, 4
          %s218 = scalar_lea.vmem %s1, %s217
          %s219 = smul.u32 8, %s25
        $region16: #{tpu_custom_call.1} parent=11 // pred_fallthru
          _
        // Predicated region
        $region17: #{tpu_custom_call.1} parent=11 // pred_check
          %p220 = pneg %p128
        $region18: #{tpu_custom_call.1} parent=11 // pred_check_branch
          %222 = sbr.rel (%p220) target = $region20
        $region19: #{tpu_custom_call.1} parent=11 // pred_region
          _
        $region20: #{tpu_custom_call.1} parent=11 // pred_fallthru
          _
        // Predicated region
        $region21: #{tpu_custom_call.1} parent=11 // pred_check
          %p223 = pneg %p149
        $region22: #{tpu_custom_call.1} parent=11 // pred_check_branch
          %225 = sbr.rel (%p223) target = $region24
        $region23: #{tpu_custom_call.1} parent=11 // pred_region
          _
        $region24: #{tpu_custom_call.1} parent=11 // pred_fallthru
          _
        // Predicated region
        $region25: #{tpu_custom_call.1} parent=11 // pred_check
          %p226 = pneg %p170
        $region26: #{tpu_custom_call.1} parent=11 // pred_check_branch
          %228 = sbr.rel (%p226) target = $region28
        $region27: #{tpu_custom_call.1} parent=11 // pred_region
          _
        $region28: #{tpu_custom_call.1} parent=11 // pred_fallthru
          _
      $region12: #{tpu_custom_call.1} parent=5 // pred_fallthru
        _
      %p229 = scmp.lt.s32.totalorder %s15, 2
      // Predicated region
      $region29: #{tpu_custom_call.1} parent=5 // pred_check
        %p230 = pneg %p229
      $region30: #{tpu_custom_call.1} parent=5 // pred_check_branch
        %232 = sbr.rel (%p230) target = $region32
      $region31: #{tpu_custom_call.1} parent=5 // pred_region
        // Predicated region
        $region33: #{tpu_custom_call.1} parent=31 // pred_check
          %p233 = pneg %p49
        $region34: #{tpu_custom_call.1} parent=31 // pred_check_branch
          %235 = sbr.rel (%p233) target = $region36
        $region35: #{tpu_custom_call.1} parent=31 // pred_region
          %p236 = scmp.lt.s32.totalorder %s22, 1
          %s237 = scalar_select %p236, %s22, 1
          %p238 = scmp.lt.s32.totalorder %s23, 0
          %s239 = scalar_select %p238, %s23, 0
          %s240 = sadd.s32 %s239, %s237
          %s241 = smul.addr %s240, 8
          %s242 = scalar_lea.vmem %s0, %s241
        $region36: #{tpu_custom_call.1} parent=31 // pred_fallthru
          _
        // Predicated region
        $region37: #{tpu_custom_call.1} parent=31 // pred_check
          %p243 = pneg %p101
        $region38: #{tpu_custom_call.1} parent=31 // pred_check_branch
          %245 = sbr.rel (%p243) target = $region40
        $region39: #{tpu_custom_call.1} parent=31 // pred_region
          %s246 = smul.u32 4, %s22
          %p247 = scmp.lt.s32.totalorder %s246, 7
          %s248 = scalar_select %p247, %s246, 7
          %s249 = smul.addr %s248, 8
          %s250 = scalar_lea.vmem %s2, %s249
          %s251 = smul.u32 4, %s22
        $region40: #{tpu_custom_call.1} parent=31 // pred_fallthru
          _
      $region32: #{tpu_custom_call.1} parent=5 // pred_fallthru
        _
      %p252 = scmp.le.s32.totalorder 1, %s15
      %p253 = scmp.lt.s32.totalorder %s15, 3
      %p254 = pnand %p252, %p253
      %p255 = pneg %p254
      // Predicated region
      $region41: #{tpu_custom_call.1} parent=5 // pred_check
        _
      $region42: #{tpu_custom_call.1} parent=5 // pred_check_branch
        %257 = sbr.rel (%p254) target = $region44
      $region43: #{tpu_custom_call.1} parent=5 // pred_region
        %s258 = ssub.s32 %s15, 1
        %p259 = scmp.lt.s32.totalorder %s24, 1
        %s260 = scalar_select %p259, %s24, 1
        %p261 = scmp.lt.s32.totalorder %s25, 0
        %s262 = scalar_select %p261, %s25, 0
        %s263 = sadd.s32 %s262, %s260
        %s264 = smul.addr %s263, 8
        %s265 = scalar_lea.vmem %s0, %s264
        %p266 = pneg %p55
        %p267 = pneg %p52
        %s268 = smul.u32 8, %s25
        %p269 = scmp.lt.s32.totalorder %s268, 7
        %s270 = scalar_select %p269, %s268, 7
        %s271 = smul.addr %s270, 4
        %s272 = scalar_lea.vmem %s1, %s271
        %p273 = pneg %p81
        %p274 = pneg %p78
        %s275 = smul.u32 4, %s24
        %p276 = scmp.lt.s32.totalorder %s275, 7
        %s277 = scalar_select %p276, %s275, 7
        %s278 = smul.addr %s277, 8
        %s279 = scalar_lea.vmem %s2, %s278
        %p280 = pneg %p107
        %p281 = pneg %p104
        %p282 = pneg %p128
        %p283 = pneg %p125
        %p284 = pneg %p149
        %p285 = pneg %p146
        %p286 = pneg %p170
        %p287 = pneg %p167
        %p288 = pneg %p196
        %p289 = pneg %p193
        %s290 = sand.u32 %s183, 1
        %s291 = scalar_lea.sflag [#allocation4], %s290
        %s292 = sand.u32 %s183, 1
        %s293 = smul.addr %s292, 16
        %s294 = scalar_lea.vmem [#allocation3], %s293
        %p295 = scmp.lt.s32.totalorder %s24, 1
        %s296 = scalar_select %p295, %s24, 1
        %p297 = scmp.lt.s32.totalorder %s25, 0
        %s298 = scalar_select %p297, %s25, 0
        %s299 = sadd.s32 %s298, %s296
        %s300 = smul.addr %s299, 8
        %s301 = scalar_lea.vmem %s0, %s300
        %s302 = smul.u32 8, %s25
        %p303 = scmp.lt.s32.totalorder %s302, 7
        %s304 = scalar_select %p303, %s302, 7
        %s305 = smul.addr %s304, 4
        %s306 = scalar_lea.vmem %s1, %s305
        %s307 = smul.u32 8, %s25
        %s308 = smul.u32 4, %s24
        %p309 = scmp.lt.s32.totalorder %s308, 7
        %s310 = scalar_select %p309, %s308, 7
        %s311 = smul.addr %s310, 8
        %s312 = scalar_lea.vmem %s2, %s311
        %s313 = smul.u32 4, %s24
        %s314 = smul.u32 4, %s24
        %p316 = scmp.eq.s32.totalorder %s25, 0
        // Predicated region
        $region45: #{tpu_custom_call.1} parent=43 // pred_check
          %p317 = pneg %p316
        $region46: #{tpu_custom_call.1} parent=43 // pred_check_branch
          %319 = sbr.rel (%p317) target = $region48
        $region47: #{tpu_custom_call.1} parent=43 // pred_region
          %vm320 = vcmask 130048
          %321 = vst.msk [vmem:[#allocation2] sm:$0xff] %vm320, 0.0
          %322 = vst.msk [vmem:[#allocation2 + $0x8] sm:$0xff] %vm320, 0.0
          %323 = vst.msk [vmem:[#allocation2 + $0x10] sm:$0xff] %vm320, 0.0
          %324 = vst.msk [vmem:[#allocation2 + $0x18] sm:$0xff] %vm320, 0.0
        $region48: #{tpu_custom_call.1} parent=43 // pred_fallthru
          _
        %v325 = vld [vmem:[#allocation2] sm:$0xff]
        %v326 = vld [vmem:[#allocation2 + $0x8] sm:$0xff]
        %v327 = vld [vmem:[#allocation2 + $0x10] sm:$0xff]
        %v328 = vld [vmem:[#allocation2 + $0x18] sm:$0xff]
        %v329 = vld [vmem:[%s301] sm:$0xff]
        %v330 = vunpack.c.0.s8 %v329
        %v331 = vunpack.c.1.s8 %v329
        %v332 = vunpack.c.2.s8 %v329
        %v333 = vunpack.c.3.s8 %v329
        %v334 = vcvt.s32.f32 %v330
        %v335 = vcvt.s32.f32 %v331
        %v336 = vcvt.s32.f32 %v332
        %v337 = vcvt.s32.f32 %v333
        %v338 = vpack.c.bf16 %v335, %v334
        %v339 = vpack.c.bf16 %v337, %v336
        %v340 = vld [vmem:[%s306] sm:$0xf]
        %v341 = vld [vmem:[%s306 + $0x4] sm:$0xf]
        %v342 = vld [vmem:[%s306 + $0x8] sm:$0xf]
        %v343 = vld [vmem:[%s306 + $0xc] sm:$0xf]
        %v344 = vld [vmem:[%s306 + $0x10] sm:$0xf]
        %v345 = vld [vmem:[%s306 + $0x14] sm:$0xf]
        %v346 = vld [vmem:[%s306 + $0x18] sm:$0xf]
        %v347 = vld [vmem:[%s306 + $0x1c] sm:$0xf]
        %v356 = vunpack.c.l.b16 %v340
        %v357 = vunpack.c.l.b16 %v341
        %v358 = vunpack.c.l.b16 %v342
        %v359 = vunpack.c.l.b16 %v343
        %v360 = vunpack.c.l.b16 %v344
        %v361 = vunpack.c.l.b16 %v345
        %v362 = vunpack.c.l.b16 %v346
        %v363 = vunpack.c.l.b16 %v347
        %v364 = vpack.c.b16 %v357, %v356
        %v365 = vpack.c.b16 %v359, %v358
        %v366 = vpack.c.b16 %v361, %v360
        %v367 = vpack.c.b16 %v363, %v362
        %vm372 = vcmask 523264
        %v374 = vsel %vm372, %v338, 0
        %v377 = vsel %vm372, %v339, 0
        %379 = vmatpush.bf16.msra.mxu0 0
        %380 = vmatpush.bf16.msra.mxu0 0
        %381 = vmatpush.bf16.msra.mxu0 0
        %382 = vmatpush.bf16.msra.mxu0 0
        %383 = vmatpush.bf16.msra.mxu0 %v367
        %384 = vmatpush.bf16.msra.mxu0 %v366
        %385 = vmatpush.bf16.msra.mxu0 %v365
        %386 = vmatpush.bf16.msra.mxu0 %v364
        %387 = vmatmul.bf16.gmra.mxu0 %v374
        %v388 = vpop.f32.mrf.mxu0
        %v389 = vadd.f32 0.0, %v388
        %v390 = vpop.f32.mrf.mxu0
        %v391 = vadd.f32 0.0, %v390
        %392 = vmatmul.bf16.gmra.mxu0 %v377
        %v393 = vpop.f32.mrf.mxu0
        %v394 = vadd.f32 0.0, %v393
        %v395 = vpop.f32.mrf.mxu0
        %v396 = vadd.f32 0.0, %v395
        %397 = vdwg.mxu0
        %v398 = vadd.f32 %v325, %v389
        %v399 = vadd.f32 %v326, %v391
        %v400 = vadd.f32 %v327, %v394
        %v401 = vadd.f32 %v328, %v396
        %vm402 = vcmask 130048
        %403 = vst.msk [vmem:[#allocation2] sm:$0xff] %vm402, %v398
        %404 = vst.msk [vmem:[#allocation2 + $0x8] sm:$0xff] %vm402, %v399
        %405 = vst.msk [vmem:[#allocation2 + $0x10] sm:$0xff] %vm402, %v400
        %406 = vst.msk [vmem:[#allocation2 + $0x18] sm:$0xff] %vm402, %v401
        // Predicated region
        $region49: #{tpu_custom_call.1} parent=43 // pred_check
          %p407 = pneg %p316
        $region50: #{tpu_custom_call.1} parent=43 // pred_check_branch
          %409 = sbr.rel (%p407) target = $region52
        $region51: #{tpu_custom_call.1} parent=43 // pred_region
          %v410 = vld [vmem:[#allocation2] sm:$0xff]
          %v411 = vld [vmem:[#allocation2 + $0x8] sm:$0xff]
          %v412 = vld [vmem:[#allocation2 + $0x10] sm:$0xff]
          %v413 = vld [vmem:[#allocation2 + $0x18] sm:$0xff]
          %v414 = vld [vmem:[%s312] sm:$0xff]
          %v415 = vld [vmem:[%s312 + $0x8] sm:$0xff]
          %v416 = vld [vmem:[%s312 + $0x10] sm:$0xff]
          %v417 = vld [vmem:[%s312 + $0x18] sm:$0xff]
          %419 = vset.pattern.permute.xlu0 0
          %420 = vperm.xlu0 %419, %v414
          %v421 = vpop.permute.xlu0 %420
          %424 = vset.pattern.permute.xlu0 0
          %425 = vperm.xlu0 %424, %v415
          %v426 = vpop.permute.xlu0 %425
          %429 = vset.pattern.permute.xlu0 0
          %430 = vperm.xlu0 %429, %v416
          %v431 = vpop.permute.xlu0 %430
          %434 = vset.pattern.permute.xlu0 0
          %435 = vperm.xlu0 %434, %v417
          %v436 = vpop.permute.xlu0 %435
          %v438 = vmul.f32 %v410, %v421
          %v439 = vmul.f32 %v411, %v426
          %v440 = vmul.f32 %v412, %v431
          %v441 = vmul.f32 %v413, %v436
          %v442 = vpack.c.bf16 %v439, %v438
          %v443 = vpack.c.bf16 %v441, %v440
          %v444 = vld [vmem:[%s3] sm:$0xf]
          %v445 = vld [vmem:[%s3 + $0x4] sm:$0xf]
          %v446 = vld [vmem:[%s4] sm:$0x1]
          %v448 = vperm.slane %v446, 0
          %v452 = vunpack.c.l.b16 %v444
          %v453 = vunpack.c.l.b16 %v445
          %v454 = vpack.c.b16 %v453, %v452
          %v457 = vsel %vm402, %v442, 0
          %v460 = vsel %vm402, %v443, 0
          %462 = vmatpush.bf16.msra.mxu0 0
          %463 = vmatpush.bf16.msra.mxu0 0
          %464 = vmatpush.bf16.msra.mxu0 0
          %465 = vmatpush.bf16.msra.mxu0 0
          %466 = vmatpush.bf16.msra.mxu0 0
          %467 = vmatpush.bf16.msra.mxu0 0
          %468 = vmatpush.bf16.msra.mxu0 0
          %469 = vmatpush.bf16.msra.mxu0 %v454
          %470 = vmatmul.bf16.gmra.mxu0 %v457
          %v471 = vpop.f32.mrf.mxu0
          %v472 = vadd.f32 %v448, %v471
          %v473 = vpop.f32.mrf.mxu0
          %v474 = vadd.f32 %v448, %v473
          %475 = vmatmul.bf16.gmra.mxu0 %v460
          %v476 = vpop.f32.mrf.mxu0
          %v477 = vadd.f32 %v448, %v476
          %v478 = vpop.f32.mrf.mxu0
          %v479 = vadd.f32 %v448, %v478
          %480 = vdwg.mxu0
          %v481 = vmax.f32 %v472, 0.0
          %v482 = vmax.f32 %v474, 0.0
          %v483 = vmax.f32 %v477, 0.0
          %v484 = vmax.f32 %v479, 0.0
          %v485 = vpack.c.bf16 %v482, %v481
          %v486 = vpack.c.bf16 %v484, %v483
          %v487 = vld [vmem:[%s5] sm:$0xf]
          %v488 = vld [vmem:[%s5 + $0x4] sm:$0xf]
          %v489 = vld [vmem:[%s5 + $0x8] sm:$0xf]
          %v490 = vld [vmem:[%s5 + $0xc] sm:$0xf]
          %v491 = vld [vmem:[%s5 + $0x10] sm:$0xf]
          %v492 = vld [vmem:[%s5 + $0x14] sm:$0xf]
          %v493 = vld [vmem:[%s5 + $0x18] sm:$0xf]
          %v494 = vld [vmem:[%s5 + $0x1c] sm:$0xf]
          %v495 = vld [vmem:[%s5 + $0x20] sm:$0xf]
          %v496 = vld [vmem:[%s5 + $0x24] sm:$0xf]
          %v497 = vld [vmem:[%s5 + $0x28] sm:$0xf]
          %v498 = vld [vmem:[%s5 + $0x2c] sm:$0xf]
          %v499 = vld [vmem:[%s5 + $0x30] sm:$0xf]
          %v500 = vld [vmem:[%s5 + $0x34] sm:$0xf]
          %v501 = vld [vmem:[%s5 + $0x38] sm:$0xf]
          %v502 = vld [vmem:[%s5 + $0x3c] sm:$0xf]
          %v519 = vunpack.c.l.b16 %v487
          %v520 = vunpack.c.l.b16 %v488
          %v521 = vunpack.c.l.b16 %v489
          %v522 = vunpack.c.l.b16 %v490
          %v523 = vunpack.c.l.b16 %v491
          %v524 = vunpack.c.l.b16 %v492
          %v525 = vunpack.c.l.b16 %v493
          %v526 = vunpack.c.l.b16 %v494
          %v527 = vunpack.c.l.b16 %v495
          %v528 = vunpack.c.l.b16 %v496
          %v529 = vunpack.c.l.b16 %v497
          %v530 = vunpack.c.l.b16 %v498
          %v531 = vunpack.c.l.b16 %v499
          %v532 = vunpack.c.l.b16 %v500
          %v533 = vunpack.c.l.b16 %v501
          %v534 = vunpack.c.l.b16 %v502
          %v535 = vpack.c.b16 %v520, %v519
          %v536 = vpack.c.b16 %v522, %v521
          %v537 = vpack.c.b16 %v524, %v523
          %v538 = vpack.c.b16 %v526, %v525
          %v539 = vpack.c.b16 %v528, %v527
          %v540 = vpack.c.b16 %v530, %v529
          %v541 = vpack.c.b16 %v532, %v531
          %v542 = vpack.c.b16 %v534, %v533
          %551 = vmatpush.bf16.msra.mxu0 %v542
          %552 = vmatpush.bf16.msra.mxu0 %v541
          %553 = vmatpush.bf16.msra.mxu0 %v540
          %554 = vmatpush.bf16.msra.mxu0 %v539
          %555 = vmatpush.bf16.msra.mxu0 %v538
          %556 = vmatpush.bf16.msra.mxu0 %v537
          %557 = vmatpush.bf16.msra.mxu0 %v536
          %558 = vmatpush.bf16.msra.mxu0 %v535
          %559 = vmatmul.bf16.gmra.mxu0 %v485
          %v560 = vpop.f32.mrf.mxu0
          %v561 = vadd.f32 0.0, %v560
          %v562 = vpop.f32.mrf.mxu0
          %v563 = vadd.f32 0.0, %v562
          %564 = vmatmul.bf16.gmra.mxu0 %v486
          %v565 = vpop.f32.mrf.mxu0
          %v566 = vadd.f32 0.0, %v565
          %v567 = vpop.f32.mrf.mxu0
          %v568 = vadd.f32 0.0, %v567
          %569 = vdwg.mxu0
          %v570 = vmul.f32 %v421, %v561
          %v571 = vmul.f32 %v426, %v563
          %v572 = vmul.f32 %v431, %v566
          %v573 = vmul.f32 %v436, %v568
          %v574 = vpack.c.bf16 %v570, %v570
          %v575 = vpack.c.bf16 %v571, %v571
          %v576 = vpack.c.bf16 %v572, %v572
          %v577 = vpack.c.bf16 %v573, %v573
          %vm578 = vcmask 519168
          %579 = vst.msk [vmem:[%s294] sm:$0xf] %vm578, %v574
          %580 = vst.msk [vmem:[%s294 + $0x4] sm:$0xf] %vm578, %v575
          %581 = vst.msk [vmem:[%s294 + $0x8] sm:$0xf] %vm578, %v576
          %582 = vst.msk [vmem:[%s294 + $0xc] sm:$0xf] %vm578, %v577
        $region52: #{tpu_custom_call.1} parent=43 // pred_fallthru
          _
        %s583 = sand.u32 %s183, 1
        %s584 = scalar_lea.sflag [#allocation4], %s583
        %s585 = sand.u32 %s183, 1
        %s586 = smul.addr %s585, 16
        %s587 = scalar_lea.vmem [#allocation3], %s586
        // Predicated region
        $region53: #{tpu_custom_call.1} parent=43 // pred_check
          %p588 = pneg %p193
        $region54: #{tpu_custom_call.1} parent=43 // pred_check_branch
          %590 = sbr.rel (%p588) target = $region56
        $region55: #{tpu_custom_call.1} parent=43 // pred_region
          %s591 = smul.u32 4, %s24
          %593 = vsyncadd %s584, 0
          %s594 = smul.addr %s591, 4
          %s595 = scalar_lea.hbm %s6, %s594
          %s596 = sshll.u32 %s587, 4
          %s597 = int_to_ptr.vmem [resolvable:$true] %s596
          %s598 = sshll.u32 %s595, 4
          %s599 = int_to_ptr.hbm [resolvable:$true] %s598
          %604 = dma.vmem_to_hbm [thread:$0]  %s597, 256, %s599, %s584, 64, 64, 4
        $region56: #{tpu_custom_call.1} parent=43 // pred_fallthru
          _
      $region44: #{tpu_custom_call.1} parent=5 // pred_fallthru
        _
      %p605 = scmp.le.s32.totalorder 2, %s15
      // Predicated region
      $region57: #{tpu_custom_call.1} parent=5 // pred_check
        %p606 = pneg %p605
      $region58: #{tpu_custom_call.1} parent=5 // pred_check_branch
        %608 = sbr.rel (%p606) target = $region60
      $region59: #{tpu_custom_call.1} parent=5 // pred_region
        %s609 = ssub.s32 %s15, 2
        // Predicated region
        $region61: #{tpu_custom_call.1} parent=59 // pred_check
          %p610 = pneg %p199
        $region62: #{tpu_custom_call.1} parent=59 // pred_check_branch
          %612 = sbr.rel (%p610) target = $region64
        $region63: #{tpu_custom_call.1} parent=59 // pred_region
          %s613 = sand.u32 %s184, 1
          %s614 = scalar_lea.sflag [#allocation4], %s613
          %s615 = sand.u32 %s184, 1
          %s616 = smul.addr %s615, 16
          %s617 = scalar_lea.vmem [#allocation3], %s616
          %619 = dma.done %s614, 256
        $region64: #{tpu_custom_call.1} parent=59 // pred_fallthru
          _
      $region60: #{tpu_custom_call.1} parent=5 // pred_fallthru
        _
    $region6: #{tpu_custom_call.1} parent=1 // loop_footer
      %s19 = sadd.s32 1, %s15
    $region7: #{tpu_custom_call.1} parent=1 // loop_footer_branch
      %14 = sbr.rel target = $region3
    $region8: #{tpu_custom_call.1} parent=1 // loop_exit
      _
    %620 = vsyncpa [#allocation4], 1
    %s621 = scalar_lea.sflag [#allocation4], 1
    %622 = vsyncpa %s621, 1

</llo_original>
